<compile_context>
chip_gen: v5e
topology: v5e:2x2
jax: 0.10.0
libtpu: 0.0.40
codegen_flags: <defaults>
</compile_context>

<pallas_src>
import jax
import jax.numpy as jnp
from jax.experimental import pallas as pl
from jax.experimental.pallas import tpu as pltpu

BN_EPS = 1e-3  # nn.BatchNorm1d(..., eps=0.001)


def _round_up(n, m):
    return ((n + m - 1) // m) * m


def decoder_forward(x, params, *, tile_n=512):
    """x: (B, n_input) f32.  params: dict of pre-transposed weights/biases.

    tile_n: lane width of each streamed weight/output tile (multiple of 128).
    512 is safe on all generations; 1024-2048 is reasonable on v5e/v6e
    (128 MiB VMEM), keep <=512-1024 on v7x (64 MiB VMEM).
    """
    assert tile_n % 128 == 0, "tile_n must be a multiple of 128 (lane width)"

    B, n_input = x.shape
    n_hidden = params["w1"].shape[1]
    n_output = params["wm"].shape[1]

    B_pad = _round_up(max(B, 16), 16)     # bf16 packs two rows per sublane
    K_pad = _round_up(n_input, 128)
    H_pad = _round_up(n_hidden, 128)
    N_pad = _round_up(n_output, 128)      # head padding decoupled from TN
    TN = min(tile_n, N_pad)
    while N_pad % TN:                     # TN must divide N_pad; 128 always does
        TN -= 128
    inner = N_pad // TN                   # weight tiles per head

    def pad2(a, rows, cols):
        return jnp.pad(a, ((0, rows - a.shape[0]), (0, cols - a.shape[1])))

    # ---- pad + cast operands (outside the kernels) -----------------------------
    x_p = pad2(x, B_pad, K_pad).astype(jnp.bfloat16)
    w1_p = pad2(params["w1"], K_pad, H_pad).astype(jnp.bfloat16)
    b1_p = pad2(params["b1"], 1, H_pad)
    gamma_p = pad2(params["gamma"], 1, H_pad)
    beta_p = pad2(params["beta"], 1, H_pad)

    # Fused heads: columns [0, N_pad) = mean head, [N_pad, 2*N_pad) = var head.
    wh = jnp.concatenate(
        [pad2(params["wm"], H_pad, N_pad), pad2(params["wv"], H_pad, N_pad)], axis=1
    ).astype(jnp.bfloat16)
    bh = jnp.concatenate(
        [pad2(params["bm"], 1, N_pad), pad2(params["bv"], 1, N_pad)], axis=1
    )

    inv_b = 1.0 / float(B)

    # ================= Kernel A: Linear -> BatchNorm(train) -> ReLU =============
    def stage1_kernel(x_ref, w1_ref, b1_ref, g_ref, be_ref, p_ref):
        h = jnp.dot(x_ref[...], w1_ref[...],
                    preferred_element_type=jnp.float32) + b1_ref[...]
        # Mask padded batch rows so BN stats cover the real batch only.
        rows = jax.lax.broadcasted_iota(jnp.int32, h.shape, 0)
        mask = (rows < B).astype(jnp.float32)
        mu = jnp.sum(h * mask, axis=0, keepdims=True) * inv_b
        cen = (h - mu) * mask
        var = jnp.sum(cen * cen, axis=0, keepdims=True) * inv_b
        # Fold the BN affine into a single per-lane scale/shift.
        scale = g_ref[...] * jax.lax.rsqrt(var + BN_EPS)
        shift = be_ref[...] - mu * scale
        p_ref[...] = jnp.maximum(h * scale + shift, 0.0).astype(p_ref.dtype)

    stage1_bytes = int(
        (x_p.size + w1_p.size) * 2
        + (b1_p.size + gamma_p.size + beta_p.size) * 4
        + B_pad * H_pad * 2
    )
    stage1_vmem = min(max(4 * stage1_bytes, 32 << 20), 48 << 20)

    p_act = pl.pallas_call(
        stage1_kernel,
        out_shape=jax.ShapeDtypeStruct((B_pad, H_pad), jnp.bfloat16),
        compiler_params=pltpu.CompilerParams(vmem_limit_bytes=stage1_vmem),
        cost_estimate=pl.CostEstimate(
            flops=int(2 * B_pad * K_pad * H_pad),
            transcendentals=0,
            bytes_accessed=stage1_bytes,
        ),
    )(x_p, w1_p, b1_p, gamma_p, beta_p)

    # ================= Kernel B: fused mean/var heads (weight streaming) ========
    def heads_kernel(p_ref, wh_ref, bh_ref, out_ref):
        z = jnp.dot(p_ref[...], wh_ref[...],
                    preferred_element_type=jnp.float32) + bh_ref[...]
        t = pl.program_id(0)

        @pl.when(t < inner)      # mean-head tiles
        def _mean():
            out_ref[...] = z.astype(out_ref.dtype)

        @pl.when(t >= inner)     # var-head tiles
        def _var():
            # exp in f32 (portable); result stored as bf16.
            # TODO(synk): on v6e/v7x a bf16 EUP exp path is ~2x faster.
            out_ref[...] = jnp.exp(z).astype(out_ref.dtype)

    heads_bytes = int(
        B_pad * H_pad * 2          # resident p (bf16)
        + wh.size * 2              # streamed bf16 head weights
        + bh.size * 4              # f32 head biases
        + B_pad * 2 * N_pad * 2    # bf16 fused output
    )
    heads_vmem_need = (
        2 * B_pad * H_pad * 2                                # p (conservative x2)
        + 2 * (H_pad * TN * 2 + TN * 4 + B_pad * TN * 2)     # double-buffered tiles
        + B_pad * TN * 4                                     # f32 accumulator temp
    )
    heads_vmem = min(max(2 * heads_vmem_need, 32 << 20), 48 << 20)

    fused = pl.pallas_call(
        heads_kernel,
        out_shape=jax.ShapeDtypeStruct((B_pad, 2 * N_pad), jnp.bfloat16),
        grid_spec=pltpu.PrefetchScalarGridSpec(
            num_scalar_prefetch=0,
            grid=(2 * inner,),
            in_specs=[
                # Resident activations: same block every step -> DMAed once.
                # (Could add pipeline_mode=pl.Buffered(1) to drop the unused
                #  second buffer; omitted for portability.)
                pl.BlockSpec((B_pad, H_pad), lambda t: (0, 0)),
                # Streamed fused-head weight / bias tiles.
                pl.BlockSpec((H_pad, TN), lambda t: (0, t)),
                pl.BlockSpec((1, TN), lambda t: (0, t)),
            ],
            out_specs=pl.BlockSpec((B_pad, TN), lambda t: (0, t)),
        ),
        compiler_params=pltpu.CompilerParams(
            dimension_semantics=("parallel",),
            vmem_limit_bytes=heads_vmem,
        ),
        cost_estimate=pl.CostEstimate(
            flops=int(2 * B_pad * H_pad * 2 * N_pad),
            transcendentals=int(B_pad * N_pad),
            bytes_accessed=heads_bytes,
        ),
    )(p_act, wh, bh)

    p_m = fused[:B, :n_output].astype(x.dtype)
    p_v = fused[:B, N_pad:N_pad + n_output].astype(x.dtype)
    return p_m, p_v


def init_params(key, n_input, n_hidden, n_output):
    """Deterministic synthetic parameters (PyTorch-like uniform init), f32."""
    ks = jax.random.split(key, 6)

    def lin(kw, kb, fan_in, fan_out):
        bound = 1.0 / jnp.sqrt(jnp.float32(fan_in))
        w = jax.random.uniform(kw, (fan_in, fan_out), jnp.float32, -bound, bound)
        b = jax.random.uniform(kb, (1, fan_out), jnp.float32, -bound, bound)
        return w, b

    w1, b1 = lin(ks[0], ks[1], n_input, n_hidden)
    wm, bm = lin(ks[2], ks[3], n_hidden, n_output)
    wv, bv = lin(ks[4], ks[5], n_hidden, n_output)
    gamma = jnp.ones((1, n_hidden), jnp.float32)   # BatchNorm1d weight
    beta = jnp.zeros((1, n_hidden), jnp.float32)   # BatchNorm1d bias
    return {"w1": w1, "b1": b1, "gamma": gamma, "beta": beta,
            "wm": wm, "bm": bm, "wv": wv, "bv": bv}


def decoder_reference(x, params):
    """Plain-JAX reference mirroring the kernel's numerics (bf16 MXU operands)."""
    def bq(a):  # bf16 quantization round-trip applied to matmul operands
        return a.astype(jnp.bfloat16).astype(jnp.float32)

    h = bq(x) @ bq(params["w1"]) + params["b1"]
    mu = jnp.mean(h, axis=0, keepdims=True)
    var = jnp.mean((h - mu) ** 2, axis=0, keepdims=True)
    h = (h - mu) * jax.lax.rsqrt(var + BN_EPS) * params["gamma"] + params["beta"]
    p = jnp.maximum(h, 0.0)
    p_m = bq(p) @ bq(params["wm"]) + params["bm"]
    p_v = jnp.exp(bq(p) @ bq(params["wv"]) + params["bv"])
    return p_m, p_v


if __name__ == "__main__":
    # small shapes consistent with the module's forward
    B, n_input, n_hidden, n_output = 8, 16, 32, 16

    key = jax.random.PRNGKey(0)
    kx, kp = jax.random.split(key)
    x = jax.random.normal(kx, (B, n_input), jnp.float32)
    params = init_params(kp, n_input, n_hidden, n_output)

    p_m, p_v = decoder_forward(x, params)
    jax.block_until_ready((p_m, p_v))

    rm, rv = decoder_reference(x, params)
    assert p_m.shape == (B, n_output) and p_v.shape == (B, n_output)
    assert jnp.allclose(p_m, rm, rtol=1e-2, atol=1e-2), "mean head mismatch"
    assert jnp.allclose(p_v, rv, rtol=1e-2, atol=1e-2), "var head mismatch"

    print("KERNEL_OK")
</pallas_src>

<mosaic_0001>
module attributes {stable_mosaic.version = 11 : i64} {
  func.func @stage1_kernel(%arg0: memref<16x128xbf16, #tpu.memory_space<vmem>>, %arg1: memref<128x128xbf16, #tpu.memory_space<vmem>>, %arg2: memref<1x128xf32, #tpu.memory_space<vmem>>, %arg3: memref<1x128xf32, #tpu.memory_space<vmem>>, %arg4: memref<1x128xf32, #tpu.memory_space<vmem>>, %arg5: memref<16x128xbf16, #tpu.memory_space<vmem>>) attributes {dimension_semantics = [], scalar_prefetch = 0 : i64, scratch_operands = 0 : i64, tpu.core_type = #tpu.core_type<tc>} {
    %c0 = arith.constant 0 : index
    %c0_0 = arith.constant 0 : index
    %0 = vector.load %arg0[%c0, %c0_0] : memref<16x128xbf16, #tpu.memory_space<vmem>>, vector<16x128xbf16>
    %c0_1 = arith.constant 0 : index
    %c0_2 = arith.constant 0 : index
    %1 = vector.load %arg1[%c0_1, %c0_2] : memref<128x128xbf16, #tpu.memory_space<vmem>>, vector<128x128xbf16>
    %cst = arith.constant dense<0.000000e+00> : vector<16x128xf32>
    %2 = tpu.matmul %0, %1, %cst {dimension_numbers = #tpu.dot_dimension_numbers<[1], [0], [0], [1], [0, 0, 1, 1], [], []>} : vector<16x128xbf16>, vector<128x128xbf16>, vector<16x128xf32> -> vector<16x128xf32>
    %c0_3 = arith.constant 0 : index
    %c0_4 = arith.constant 0 : index
    %3 = vector.load %arg2[%c0_3, %c0_4] : memref<1x128xf32, #tpu.memory_space<vmem>>, vector<1x128xf32>
    %4 = vector.broadcast %3 : vector<1x128xf32> to vector<16x128xf32>
    %5 = arith.addf %2, %4 : vector<16x128xf32>
    %6 = tpu.iota {dimensions = array<i32: 0>} : vector<16x128xi32>
    %c8_i32 = arith.constant 8 : i32
    %7 = vector.broadcast %c8_i32 : i32 to vector<16x128xi32>
    %8 = arith.cmpi slt, %6, %7 : vector<16x128xi32>
    %9 = arith.extui %8 : vector<16x128xi1> to vector<16x128xi32>
    %10 = arith.sitofp %9 : vector<16x128xi32> to vector<16x128xf32>
    %11 = arith.mulf %5, %10 : vector<16x128xf32>
    %cst_5 = arith.constant dense<0.000000e+00> : vector<128xf32>
    %12 = vector.multi_reduction <add>, %11, %cst_5 [0] : vector<16x128xf32> to vector<128xf32>
    %13 = vector.shape_cast %12 : vector<128xf32> to vector<1x128xf32>
    %cst_6 = arith.constant 1.250000e-01 : f32
    %14 = vector.broadcast %cst_6 : f32 to vector<1x128xf32>
    %15 = arith.mulf %13, %14 : vector<1x128xf32>
    %16 = vector.broadcast %15 : vector<1x128xf32> to vector<16x128xf32>
    %17 = arith.subf %5, %16 : vector<16x128xf32>
    %18 = arith.mulf %17, %10 : vector<16x128xf32>
    %19 = arith.mulf %18, %18 : vector<16x128xf32>
    %cst_7 = arith.constant dense<0.000000e+00> : vector<128xf32>
    %20 = vector.multi_reduction <add>, %19, %cst_7 [0] : vector<16x128xf32> to vector<128xf32>
    %21 = vector.shape_cast %20 : vector<128xf32> to vector<1x128xf32>
    %cst_8 = arith.constant 1.250000e-01 : f32
    %22 = vector.broadcast %cst_8 : f32 to vector<1x128xf32>
    %23 = arith.mulf %21, %22 : vector<1x128xf32>
    %c0_9 = arith.constant 0 : index
    %c0_10 = arith.constant 0 : index
    %24 = vector.load %arg3[%c0_9, %c0_10] : memref<1x128xf32, #tpu.memory_space<vmem>>, vector<1x128xf32>
    %cst_11 = arith.constant 1.000000e-03 : f32
    %25 = vector.broadcast %cst_11 : f32 to vector<1x128xf32>
    %26 = arith.addf %23, %25 : vector<1x128xf32>
    %27 = math.rsqrt %26 : vector<1x128xf32>
    %28 = arith.mulf %24, %27 : vector<1x128xf32>
    %c0_12 = arith.constant 0 : index
    %c0_13 = arith.constant 0 : index
    %29 = vector.load %arg4[%c0_12, %c0_13] : memref<1x128xf32, #tpu.memory_space<vmem>>, vector<1x128xf32>
    %30 = arith.mulf %15, %28 : vector<1x128xf32>
    %31 = arith.subf %29, %30 : vector<1x128xf32>
    %32 = vector.broadcast %28 : vector<1x128xf32> to vector<16x128xf32>
    %33 = arith.mulf %5, %32 : vector<16x128xf32>
    %34 = vector.broadcast %31 : vector<1x128xf32> to vector<16x128xf32>
    %35 = arith.addf %33, %34 : vector<16x128xf32>
    %cst_14 = arith.constant 0.000000e+00 : f32
    %36 = vector.broadcast %cst_14 : f32 to vector<16x128xf32>
    %37 = arith.maximumf %35, %36 : vector<16x128xf32>
    %38 = arith.truncf %37 : vector<16x128xf32> to vector<16x128xbf16>
    %c0_15 = arith.constant 0 : index
    %c0_16 = arith.constant 0 : index
    %39 = vector.load %arg5[%c0_15, %c0_16] : memref<16x128xbf16, #tpu.memory_space<vmem>>, vector<16x128xbf16>
    tpu.vector_store %arg5[%c0_15, %c0_16], %38 {strides = array<i32>} : memref<16x128xbf16, #tpu.memory_space<vmem>>, vector<16x128xbf16>,
    return
  }
}

</mosaic_0001>

<llo_original>
// kernel: tpu_custom_call.1
$region0: #{tpu_custom_call.1}
  #allocation0 [shape = 'u32[]', space=smem, size = 0x4, offset = 0x4, fixed_abs, tag = 'smem constant byte address 0x4 - core index']
  #allocation1 [shape = 'u32[72,128]{1,0:T(1,128)}', space=vmem, size = 0x9000, scoped, tag = 'internal scratch']
  %s0 = inlined_call_operand.hbm [shape: bf16[16,128], index: 0, kind: input, shape index: {}]
  %s1 = inlined_call_operand.hbm [shape: bf16[128,128], index: 1, kind: input, shape index: {}]
  %s2 = inlined_call_operand.vmem [shape: f32[1,128], index: 2, kind: input, shape index: {}]
  %s3 = inlined_call_operand.vmem [shape: f32[1,128], index: 3, kind: input, shape index: {}]
  %s4 = inlined_call_operand.vmem [shape: f32[1,128], index: 4, kind: input, shape index: {}]
  %s5 = inlined_call_operand.hbm [shape: bf16[16,128], index: 5, kind: output, shape index: {}]
  %s6 = sld [smem:[#allocation0]]
  $region38: #{tpu_custom_call.1} parent=0
    _
  %s8 = ssub.s32 1, %s6
  %s9 = scalar_select 0, %s8, %s6
  $region1: #{tpu_custom_call.1} parent=0
    #allocation2 [shape = 'u8[4096]{0}', space=vmem, size = 0x1000, scoped, tag = 'input window, operand 0, single buffered']
    #allocation3 [shape = 's32[1]{0}', space=sflag, size = 0x4, scoped, tag = 'scoped memory for tpu_custom_call.1']
    #allocation4 [shape = 's32[1]{0}', space=sflag, size = 0x4, scoped, tag = 'scoped memory for tpu_custom_call.1']
    #allocation5 [shape = 'u8[32768]{0}', space=vmem, size = 0x8000, scoped, tag = 'input window, operand 1, single buffered']
    #allocation6 [shape = 's32[1]{0}', space=sflag, size = 0x4, scoped, tag = 'scoped memory for tpu_custom_call.1']
    #allocation7 [shape = 'u8[4096]{0}', space=vmem, size = 0x1000, scoped, tag = 'output window, operand 0, single buffered']
    %10 = vsyncpa [#allocation3], 0
    %11 = vsyncpa [#allocation6], 0
    %12 = vsyncpa [#allocation4], 0
    // Predicated region
    $region2: #{tpu_custom_call.1} parent=1 // pred_check
      _
    $region3: #{tpu_custom_call.1} parent=1 // pred_check_branch
      %14 = sbr.rel (0) target = $region5
    $region4: #{tpu_custom_call.1} parent=1 // pred_region
      %16 = vsyncadd [#allocation3], 0
      %s17 = sshll.u32 %s0, 4
      %s18 = int_to_ptr.hbm [resolvable:$true] %s17
      %s19 = sshll.u32 [#allocation2], 4
      %s20 = int_to_ptr.vmem [resolvable:$true] %s19
      %25 = dma.hbm_to_vmem [thread:$0]  %s18, 128, %s20, [#allocation3], 64, 64, 4
    $region5: #{tpu_custom_call.1} parent=1 // pred_fallthru
      _
    // Predicated region
    $region6: #{tpu_custom_call.1} parent=1 // pred_check
      _
    $region7: #{tpu_custom_call.1} parent=1 // pred_check_branch
      %27 = sbr.rel (0) target = $region9
    $region8: #{tpu_custom_call.1} parent=1 // pred_region
      %29 = vsyncadd [#allocation6], 0
      %s30 = sshll.u32 %s1, 4
      %s31 = int_to_ptr.hbm [resolvable:$true] %s30
      %s32 = sshll.u32 [#allocation5], 4
      %s33 = int_to_ptr.vmem [resolvable:$true] %s32
      %38 = dma.hbm_to_vmem [thread:$0]  %s31, 1024, %s33, [#allocation6], 64, 64, 4
    $region9: #{tpu_custom_call.1} parent=1 // pred_fallthru
      _
    // Predicated region
    $region10: #{tpu_custom_call.1} parent=1 // pred_check
      _
    $region11: #{tpu_custom_call.1} parent=1 // pred_check_branch
      %40 = sbr.rel (0) target = $region13
    $region12: #{tpu_custom_call.1} parent=1 // pred_region
      _
    $region13: #{tpu_custom_call.1} parent=1 // pred_fallthru
      _
    // Predicated region
    $region14: #{tpu_custom_call.1} parent=1 // pred_check
      _
    $region15: #{tpu_custom_call.1} parent=1 // pred_check_branch
      %42 = sbr.rel (0) target = $region17
    $region16: #{tpu_custom_call.1} parent=1 // pred_region
      _
    $region17: #{tpu_custom_call.1} parent=1 // pred_fallthru
      _
    // Predicated region
    $region18: #{tpu_custom_call.1} parent=1 // pred_check
      _
    $region19: #{tpu_custom_call.1} parent=1 // pred_check_branch
      %44 = sbr.rel (0) target = $region21
    $region20: #{tpu_custom_call.1} parent=1 // pred_region
      _
    $region21: #{tpu_custom_call.1} parent=1 // pred_fallthru
      _
    // Predicated region
    $region22: #{tpu_custom_call.1} parent=1 // pred_check
      _
    $region23: #{tpu_custom_call.1} parent=1 // pred_check_branch
      %46 = sbr.rel (0) target = $region25
    $region24: #{tpu_custom_call.1} parent=1 // pred_region
      %48 = dma.done [#allocation3], 128
    $region25: #{tpu_custom_call.1} parent=1 // pred_fallthru
      _
    // Predicated region
    $region26: #{tpu_custom_call.1} parent=1 // pred_check
      _
    $region27: #{tpu_custom_call.1} parent=1 // pred_check_branch
      %50 = sbr.rel (0) target = $region29
    $region28: #{tpu_custom_call.1} parent=1 // pred_region
      %52 = dma.done [#allocation6], 1024
    $region29: #{tpu_custom_call.1} parent=1 // pred_fallthru
      _
    %v53 = vld [vmem:[#allocation2] sm:$0xf]
    %v54 = vld [vmem:[#allocation2 + $0x4] sm:$0xf]
    %v55 = vld [vmem:[#allocation5] sm:$0xf]
    %v56 = vld [vmem:[#allocation5 + $0x4] sm:$0xf]
    %v57 = vld [vmem:[#allocation5 + $0x8] sm:$0xf]
    %v58 = vld [vmem:[#allocation5 + $0xc] sm:$0xf]
    %v59 = vld [vmem:[#allocation5 + $0x10] sm:$0xf]
    %v60 = vld [vmem:[#allocation5 + $0x14] sm:$0xf]
    %v61 = vld [vmem:[#allocation5 + $0x18] sm:$0xf]
    %v62 = vld [vmem:[#allocation5 + $0x1c] sm:$0xf]
    %v63 = vld [vmem:[#allocation5 + $0x20] sm:$0xf]
    %v64 = vld [vmem:[#allocation5 + $0x24] sm:$0xf]
    %v65 = vld [vmem:[#allocation5 + $0x28] sm:$0xf]
    %v66 = vld [vmem:[#allocation5 + $0x2c] sm:$0xf]
    %v67 = vld [vmem:[#allocation5 + $0x30] sm:$0xf]
    %v68 = vld [vmem:[#allocation5 + $0x34] sm:$0xf]
    %v69 = vld [vmem:[#allocation5 + $0x38] sm:$0xf]
    %v70 = vld [vmem:[#allocation5 + $0x3c] sm:$0xf]
    %v71 = vld [vmem:[%s2] sm:$0x1]
    %v73 = vperm.slane %v71, 0
    %v77 = vunpack.c.l.b16 %v53
    %v78 = vunpack.c.l.b16 %v54
    %v79 = vpack.c.b16 %v78, %v77
    %v97 = vunpack.c.l.b16 %v55
    %v98 = vunpack.c.l.b16 %v56
    %v99 = vunpack.c.l.b16 %v57
    %v100 = vunpack.c.l.b16 %v58
    %v101 = vunpack.c.l.b16 %v59
    %v102 = vunpack.c.l.b16 %v60
    %v103 = vunpack.c.l.b16 %v61
    %v104 = vunpack.c.l.b16 %v62
    %v105 = vunpack.c.l.b16 %v63
    %v106 = vunpack.c.l.b16 %v64
    %v107 = vunpack.c.l.b16 %v65
    %v108 = vunpack.c.l.b16 %v66
    %v109 = vunpack.c.l.b16 %v67
    %v110 = vunpack.c.l.b16 %v68
    %v111 = vunpack.c.l.b16 %v69
    %v112 = vunpack.c.l.b16 %v70
    %v113 = vpack.c.b16 %v98, %v97
    %v114 = vpack.c.b16 %v100, %v99
    %v115 = vpack.c.b16 %v102, %v101
    %v116 = vpack.c.b16 %v104, %v103
    %v117 = vpack.c.b16 %v106, %v105
    %v118 = vpack.c.b16 %v108, %v107
    %v119 = vpack.c.b16 %v110, %v109
    %v120 = vpack.c.b16 %v112, %v111
    %129 = vmatpush.bf16.msra.mxu0 %v120
    %130 = vmatpush.bf16.msra.mxu0 %v119
    %131 = vmatpush.bf16.msra.mxu0 %v118
    %132 = vmatpush.bf16.msra.mxu0 %v117
    %133 = vmatpush.bf16.msra.mxu0 %v116
    %134 = vmatpush.bf16.msra.mxu0 %v115
    %135 = vmatpush.bf16.msra.mxu0 %v114
    %136 = vmatpush.bf16.msra.mxu0 %v113
    %137 = vmatmul.bf16.gmra.mxu0 %v79
    %v138 = vpop.f32.mrf.mxu0
    %v139 = vadd.f32 %v73, %v138
    %v140 = vpop.f32.mrf.mxu0
    %v141 = vadd.f32 %v73, %v140
    %142 = vdwg.mxu0
    %v143 = vlaneseq
    %v144 = vshrl.u32 %v143, 7
    %v145 = vadd.s32 %v144, 8
    %vm146 = vcmp.lt.s32.totalorder %v144, 8
    %vm147 = vcmp.lt.s32.totalorder %v145, 8
    %v148 = vsel %vm146, 1, 0
    %v149 = vsel %vm147, 1, 0
    %v150 = vcvt.s32.f32 %v148
    %v151 = vcvt.s32.f32 %v149
    %v152 = vmul.f32 %v139, %v150
    %v153 = vmul.f32 %v141, %v151
    %v154 = vadd.f32 %v152, %v153
    %v155 = vrot.slane %v154, 4
    %v156 = vadd.f32 %v154, %v155
    %v157 = vrot.slane %v156, 2
    %v158 = vadd.f32 %v156, %v157
    %v159 = vrot.slane %v158, 1
    %v160 = vadd.f32 %v158, %v159
    %v161 = vmul.f32 %v160, 0.125
    %v162 = vsub.f32 %v139, %v161
    %v163 = vsub.f32 %v141, %v161
    %v164 = vmul.f32 %v162, %v150
    %v165 = vmul.f32 %v163, %v151
    %v166 = vmul.f32 %v164, %v164
    %v167 = vmul.f32 %v165, %v165
    %v168 = vadd.f32 %v166, %v167
    %v169 = vrot.slane %v168, 4
    %v170 = vadd.f32 %v168, %v169
    %v171 = vrot.slane %v170, 2
    %v172 = vadd.f32 %v170, %v171
    %v173 = vrot.slane %v172, 1
    %v174 = vadd.f32 %v172, %v173
    %v175 = vmul.f32 %v174, 0.125
    %v176 = vld [vmem:[%s3] sm:$0x1]
    %v177 = vadd.f32 %v175, 0.001
    %v178 = vrsqrt.pop %v177
    %v179 = vmul.f32 %v178, %v177
    %v180 = vmul.f32 %v179, %v178
    %v181 = vmul.f32 0.5, %v180
    %v182 = vsub.f32 1.5, %v181
    %v183 = vmul.f32 %v178, %v182
    %vm184 = vweird.f32 %v177
    %vm185 = vweird.f32 %v178
    %vm186 = vmor %vm184, %vm185
    %v187 = vsel %vm186, %v178, %v183
    %v188 = vmul.f32 %v176, %v187
    %v189 = vld [vmem:[%s4] sm:$0x1]
    %v190 = vmul.f32 %v161, %v188
    %v191 = vsub.f32 %v189, %v190
    %v193 = vperm.slane %v188, 0
    %v195 = vmul.f32 %v139, %v193
    %v196 = vmul.f32 %v141, %v193
    %v198 = vperm.slane %v191, 0
    %v200 = vadd.f32 %v195, %v198
    %v201 = vadd.f32 %v196, %v198
    %v202 = vmax.f32 %v200, 0.0
    %v203 = vmax.f32 %v201, 0.0
    %v204 = vpack.c.bf16 %v202, %v202
    %v205 = vpack.c.bf16 %v203, %v203
    %206 = vst [vmem:[#allocation7] sm:$0xf] %v204
    %207 = vst [vmem:[#allocation7 + $0x4] sm:$0xf] %v205
    // Predicated region
    $region30: #{tpu_custom_call.1} parent=1 // pred_check
      _
    $region31: #{tpu_custom_call.1} parent=1 // pred_check_branch
      %209 = sbr.rel (0) target = $region33
    $region32: #{tpu_custom_call.1} parent=1 // pred_region
      %211 = vsyncadd [#allocation4], 0
      %s212 = sshll.u32 [#allocation7], 4
      %s213 = int_to_ptr.vmem [resolvable:$true] %s212
      %s214 = sshll.u32 %s5, 4
      %s215 = int_to_ptr.hbm [resolvable:$true] %s214
      %220 = dma.vmem_to_hbm [thread:$0]  %s213, 128, %s215, [#allocation4], 64, 64, 4
    $region33: #{tpu_custom_call.1} parent=1 // pred_fallthru
      _
    // Predicated region
    $region34: #{tpu_custom_call.1} parent=1 // pred_check
      _
    $region35: #{tpu_custom_call.1} parent=1 // pred_check_branch
      %222 = sbr.rel (0) target = $region37
    $region36: #{tpu_custom_call.1} parent=1 // pred_region
      %224 = dma.done [#allocation4], 128
    $region37: #{tpu_custom_call.1} parent=1 // pred_fallthru
      _
    %225 = vsyncpa [#allocation3], 1
    %226 = vsyncpa [#allocation6], 1
    %227 = vsyncpa [#allocation4], 1

</llo_original>
